<compile_context>
chip_gen: v6e
topology: v6e:2x2x1
jax: 0.10.0
libtpu: 0.0.40
codegen_flags: <defaults>
</compile_context>

<pallas_src>
import jax
import jax.numpy as jnp
import jax.scipy.linalg as jsl
from jax.experimental import pallas as pl
from jax.experimental.pallas import tpu as pltpu

_LANE = 128
_F32_BYTES = 4
FOLD = 8  # batch rows folded into the lane dimension


def _round_up(x, m):
    return (x + m - 1) // m * m


# ----------------------------------------------------------------- kernel ---

def _encoder_kernel(x_ref,
                    w1_ref, b1_ref,
                    w2_ref, b2_ref,
                    w3_ref, b3_ref,
                    w4_ref, b4_ref,
                    o_ref):
    """Fused MLP on lane-folded rows: (Linear -> ReLU) x3 -> Linear -> Tanh."""
    h = x_ref[...].astype(jnp.float32)  # bf16 stream -> f32 compute
    h = jnp.maximum(
        jnp.dot(h, w1_ref[...], preferred_element_type=jnp.float32) + b1_ref[...], 0.0)
    h = jnp.maximum(
        jnp.dot(h, w2_ref[...], preferred_element_type=jnp.float32) + b2_ref[...], 0.0)
    h = jnp.maximum(
        jnp.dot(h, w3_ref[...], preferred_element_type=jnp.float32) + b3_ref[...], 0.0)
    h = jnp.dot(h, w4_ref[...], preferred_element_type=jnp.float32) + b4_ref[...]
    o_ref[...] = jnp.tanh(h)


# ------------------------------------------------------- folding & sizing ---

def _fold_params(params, fold):
    """Block-diagonalize each (fan_in, fan_out) weight `fold` times and tile the
    biases, so `fold` batch rows ride together in the 128-wide lane dim."""
    folded = []
    for (w, b) in params:
        w = w.astype(jnp.float32)
        b = b.astype(jnp.float32)
        w_bd = jsl.block_diag(*([w] * fold))        # (fold*fan_in, fold*fan_out)
        b_t = jnp.tile(b, fold).reshape(1, -1)      # (1, fold*fan_out)
        folded.append((w_bd, b_t))
    return folded


def _vmem_budget_bytes():
    """Per-chip scoped-VMEM budget (~60% of physical VMEM)."""
    try:
        cap = int(pltpu.get_tpu_info().vmem_capacity_bytes)
    except Exception:
        cap = 64 << 20  # conservative default: assume v7x's 64 MiB per TC
    return int(min(0.6 * cap, 96 << 20))


def _per_row_vmem_bytes(in_lanes, act_lanes, out_lanes, x_bytes):
    """Approximate VMEM bytes per folded batch row: double-buffered x / out
    blocks plus lane-padded f32 live activations."""
    xin = 2 * _round_up(in_lanes, _LANE) * x_bytes
    out = 2 * _round_up(out_lanes, _LANE) * _F32_BYTES
    act = (_round_up(in_lanes, _LANE)
           + sum(_round_up(a, _LANE) for a in act_lanes)
           + _round_up(out_lanes, _LANE)) * _F32_BYTES
    return xin + out + act


def _choose_block_rows(folded_batch, per_row_bytes, fixed_bytes, budget,
                       max_block_rows):
    avail = max(budget - fixed_bytes, 8 * per_row_bytes)
    bb = min(int(max_block_rows), int(avail // max(per_row_bytes, 1)))
    bb = max(8, (bb // 8) * 8)                          # sublane multiple
    bb = min(bb, max(8, _round_up(folded_batch, 8)))    # no bigger than batch
    return int(bb)


# ---------------------------------------------------------------- wrapper ---

def old_encoder_forward(x, params, *,
                        fold=FOLD,
                        max_block_rows=4096,        # folded rows (= 8x original)
                        x_dtype=jnp.bfloat16,       # streaming dtype for x
                        core_parallel=False):       # set True on v7x (2 TCs)
    """x: (B, in_features). params: list of (W, b) with W = (fan_in, fan_out)."""
    B, in_features = x.shape
    latent = params[-1][0].shape[1]
    widths = [w.shape[1] for (w, _) in params[:-1]]

    fparams = _fold_params(params, fold)
    in_lanes = fold * in_features
    out_lanes = fold * latent
    act_lanes = [fold * w for w in widths]

    x_bytes = jnp.dtype(x_dtype).itemsize
    fixed = 2 * sum(w.size * _F32_BYTES + b.size * _F32_BYTES for (w, b) in fparams)
    fixed += 4 << 20  # headroom: pipeline bookkeeping / internal matmul scratch
    budget = _vmem_budget_bytes()
    per_row = _per_row_vmem_bytes(in_lanes, act_lanes, out_lanes, x_bytes)

    folded_batch = pl.cdiv(B, fold)
    bb = _choose_block_rows(folded_batch, per_row, fixed, budget, max_block_rows)

    # Pad the batch so it folds and tiles evenly, then fold rows into lanes.
    B_pad = _round_up(B, fold * bb)
    x = x.astype(x_dtype)
    if B_pad != B:
        x = jnp.pad(x, ((0, B_pad - B), (0, 0)))
    xf = x.reshape(B_pad // fold, in_lanes)          # free, contiguous reshape

    grid = (xf.shape[0] // bb,)

    flat_args = []
    in_specs = [pl.BlockSpec((bb, in_lanes), lambda i: (i, 0))]
    for (w, b) in fparams:
        flat_args += [w, b]
        # Grid-invariant: whole-array block + constant index_map -> DMA'd once,
        # stays resident in VMEM across all grid steps.
        in_specs += [pl.BlockSpec(w.shape, lambda i: (0, 0)),
                     pl.BlockSpec(b.shape, lambda i: (0, 0))]

    semantics = (pltpu.CORE_PARALLEL,) if core_parallel else ("parallel",)

    out = pl.pallas_call(
        _encoder_kernel,
        out_shape=jax.ShapeDtypeStruct((xf.shape[0], out_lanes), jnp.float32),
        grid_spec=pltpu.PrefetchScalarGridSpec(
            num_scalar_prefetch=0,
            grid=grid,
            in_specs=in_specs,
            out_specs=pl.BlockSpec((bb, out_lanes), lambda i: (i, 0)),
        ),
        compiler_params=pltpu.CompilerParams(
            dimension_semantics=semantics,
            vmem_limit_bytes=budget,
        ),
    )(xf, *flat_args)

    # Free reshape back to (B_pad, latent), then drop padded rows.
    return out.reshape(B_pad, latent)[:B]


# --------------------------------------------------------- init & reference --

def init_params(key, in_features, latent_features=5, layers_factor=8):
    """Init mirroring nn.Linear default (U[-1/sqrt(fan_in), +1/sqrt(fan_in)])."""
    widths = [4 * layers_factor, 2 * layers_factor, 1 * layers_factor]
    dims = [in_features] + widths + [latent_features]
    params = []
    for fan_in, fan_out in zip(dims[:-1], dims[1:]):
        key, kw, kb = jax.random.split(key, 3)
        bound = 1.0 / jnp.sqrt(fan_in)
        w = jax.random.uniform(kw, (fan_in, fan_out), jnp.float32, -bound, bound)
        b = jax.random.uniform(kb, (fan_out,), jnp.float32, -bound, bound)
        params.append((w, b))
    return params


def reference_forward(x, params):
    h = x.astype(jnp.float32)
    for i, (w, b) in enumerate(params):
        h = h @ w + b
        h = jnp.maximum(h, 0.0) if i < len(params) - 1 else jnp.tanh(h)
    return h


# ------------------------------------------------------------------- main ---

if __name__ == "__main__":
    key = jax.random.PRNGKey(0)
    B, in_features, latent, layers_factor = 16, 16, 5, 8

    kx, kp, kx2 = jax.random.split(key, 3)
    x = jax.random.normal(kx, (B, in_features), jnp.float32)
    params = init_params(kp, in_features, latent, layers_factor)

    # bf16 x streaming is the default -> loose tolerance vs the f32 reference.
    out = jax.block_until_ready(old_encoder_forward(x, params))
    ref = reference_forward(x, params)
    assert out.shape == (B, latent)
    assert jnp.allclose(out, ref, atol=3e-2, rtol=3e-2), \
        float(jnp.max(jnp.abs(out - ref)))

    # f32 streaming path (structure / block-diagonal fold sanity check).
    out_f32 = jax.block_until_ready(
        old_encoder_forward(x, params, x_dtype=jnp.float32))
    assert jnp.allclose(out_f32, ref, atol=3e-2, rtol=3e-2), \
        float(jnp.max(jnp.abs(out_f32 - ref)))

    # Ragged batch (B not a multiple of fold*tile) exercises pad + fold + slice.
    B2 = 13
    x2 = jax.random.normal(kx2, (B2, in_features), jnp.float32)
    out2 = jax.block_until_ready(old_encoder_forward(x2, params))
    ref2 = reference_forward(x2, params)
    assert out2.shape == (B2, latent)
    assert jnp.allclose(out2, ref2, atol=3e-2, rtol=3e-2), \
        float(jnp.max(jnp.abs(out2 - ref2)))

    print("KERNEL_OK")
</pallas_src>

<mosaic_0001>
module attributes {stable_mosaic.version = 11 : i64} {
  func.func @_encoder_kernel(%arg0: i32, %arg1: memref<8x128xbf16, #tpu.memory_space<vmem>>, %arg2: memref<128x256xf32, #tpu.memory_space<vmem>>, %arg3: memref<1x256xf32, #tpu.memory_space<vmem>>, %arg4: memref<256x128xf32, #tpu.memory_space<vmem>>, %arg5: memref<1x128xf32, #tpu.memory_space<vmem>>, %arg6: memref<128x64xf32, #tpu.memory_space<vmem>>, %arg7: memref<1x64xf32, #tpu.memory_space<vmem>>, %arg8: memref<64x40xf32, #tpu.memory_space<vmem>>, %arg9: memref<1x40xf32, #tpu.memory_space<vmem>>, %arg10: memref<8x40xf32, #tpu.memory_space<vmem>>) attributes {dimension_semantics = [#tpu.dimension_semantics<parallel>], iteration_bounds = array<i64: 1>, scalar_prefetch = 0 : i64, scratch_operands = 0 : i64, tpu.core_type = #tpu.core_type<tc>, window_params = [{transform_indices = @transform_0, window_bounds = array<i64: 8, 128>}, {pipeline_mode = #tpu.pipeline_mode<synchronous>, transform_indices = @transform_1, window_bounds = array<i64: 128, 256>}, {pipeline_mode = #tpu.pipeline_mode<synchronous>, transform_indices = @transform_2, window_bounds = array<i64: 1, 256>}, {pipeline_mode = #tpu.pipeline_mode<synchronous>, transform_indices = @transform_3, window_bounds = array<i64: 256, 128>}, {pipeline_mode = #tpu.pipeline_mode<synchronous>, transform_indices = @transform_4, window_bounds = array<i64: 1, 128>}, {pipeline_mode = #tpu.pipeline_mode<synchronous>, transform_indices = @transform_5, window_bounds = array<i64: 128, 64>}, {pipeline_mode = #tpu.pipeline_mode<synchronous>, transform_indices = @transform_6, window_bounds = array<i64: 1, 64>}, {pipeline_mode = #tpu.pipeline_mode<synchronous>, transform_indices = @transform_7, window_bounds = array<i64: 64, 40>}, {pipeline_mode = #tpu.pipeline_mode<synchronous>, transform_indices = @transform_8, window_bounds = array<i64: 1, 40>}, {transform_indices = @transform_9, window_bounds = array<i64: 8, 40>}]} {
    %c0 = arith.constant 0 : index
    %c0_0 = arith.constant 0 : index
    %0 = vector.load %arg1[%c0, %c0_0] : memref<8x128xbf16, #tpu.memory_space<vmem>>, vector<8x128xbf16>
    %1 = arith.extf %0 : vector<8x128xbf16> to vector<8x128xf32>
    %c0_1 = arith.constant 0 : index
    %c0_2 = arith.constant 0 : index
    %2 = vector.load %arg2[%c0_1, %c0_2] : memref<128x256xf32, #tpu.memory_space<vmem>>, vector<128x256xf32>
    %cst = arith.constant dense<0.000000e+00> : vector<8x256xf32>
    %3 = tpu.matmul %1, %2, %cst {dimension_numbers = #tpu.dot_dimension_numbers<[1], [0], [0], [1], [0, 0, 1, 1], [], []>} : vector<8x128xf32>, vector<128x256xf32>, vector<8x256xf32> -> vector<8x256xf32>
    %c0_3 = arith.constant 0 : index
    %c0_4 = arith.constant 0 : index
    %4 = vector.load %arg3[%c0_3, %c0_4] : memref<1x256xf32, #tpu.memory_space<vmem>>, vector<1x256xf32>
    %5 = vector.broadcast %4 : vector<1x256xf32> to vector<8x256xf32>
    %6 = arith.addf %3, %5 : vector<8x256xf32>
    %cst_5 = arith.constant 0.000000e+00 : f32
    %7 = vector.broadcast %cst_5 : f32 to vector<8x256xf32>
    %8 = arith.maximumf %6, %7 : vector<8x256xf32>
    %c0_6 = arith.constant 0 : index
    %c0_7 = arith.constant 0 : index
    %9 = vector.load %arg4[%c0_6, %c0_7] : memref<256x128xf32, #tpu.memory_space<vmem>>, vector<256x128xf32>
    %cst_8 = arith.constant dense<0.000000e+00> : vector<8x128xf32>
    %10 = tpu.matmul %8, %9, %cst_8 {dimension_numbers = #tpu.dot_dimension_numbers<[1], [0], [0], [1], [0, 0, 1, 1], [], []>} : vector<8x256xf32>, vector<256x128xf32>, vector<8x128xf32> -> vector<8x128xf32>
    %c0_9 = arith.constant 0 : index
    %c0_10 = arith.constant 0 : index
    %11 = vector.load %arg5[%c0_9, %c0_10] : memref<1x128xf32, #tpu.memory_space<vmem>>, vector<1x128xf32>
    %12 = vector.broadcast %11 : vector<1x128xf32> to vector<8x128xf32>
    %13 = arith.addf %10, %12 : vector<8x128xf32>
    %cst_11 = arith.constant 0.000000e+00 : f32
    %14 = vector.broadcast %cst_11 : f32 to vector<8x128xf32>
    %15 = arith.maximumf %13, %14 : vector<8x128xf32>
    %c0_12 = arith.constant 0 : index
    %c0_13 = arith.constant 0 : index
    %16 = vector.load %arg6[%c0_12, %c0_13] : memref<128x64xf32, #tpu.memory_space<vmem>>, vector<128x64xf32>
    %cst_14 = arith.constant dense<0.000000e+00> : vector<8x64xf32>
    %17 = tpu.matmul %15, %16, %cst_14 {dimension_numbers = #tpu.dot_dimension_numbers<[1], [0], [0], [1], [0, 0, 1, 1], [], []>} : vector<8x128xf32>, vector<128x64xf32>, vector<8x64xf32> -> vector<8x64xf32>
    %c0_15 = arith.constant 0 : index
    %c0_16 = arith.constant 0 : index
    %18 = vector.load %arg7[%c0_15, %c0_16] : memref<1x64xf32, #tpu.memory_space<vmem>>, vector<1x64xf32>
    %19 = vector.broadcast %18 : vector<1x64xf32> to vector<8x64xf32>
    %20 = arith.addf %17, %19 : vector<8x64xf32>
    %cst_17 = arith.constant 0.000000e+00 : f32
    %21 = vector.broadcast %cst_17 : f32 to vector<8x64xf32>
    %22 = arith.maximumf %20, %21 : vector<8x64xf32>
    %c0_18 = arith.constant 0 : index
    %c0_19 = arith.constant 0 : index
    %23 = vector.load %arg8[%c0_18, %c0_19] : memref<64x40xf32, #tpu.memory_space<vmem>>, vector<64x40xf32>
    %cst_20 = arith.constant dense<0.000000e+00> : vector<8x40xf32>
    %24 = tpu.matmul %22, %23, %cst_20 {dimension_numbers = #tpu.dot_dimension_numbers<[1], [0], [0], [1], [0, 0, 1, 1], [], []>} : vector<8x64xf32>, vector<64x40xf32>, vector<8x40xf32> -> vector<8x40xf32>
    %c0_21 = arith.constant 0 : index
    %c0_22 = arith.constant 0 : index
    %25 = vector.load %arg9[%c0_21, %c0_22] : memref<1x40xf32, #tpu.memory_space<vmem>>, vector<1x40xf32>
    %26 = vector.broadcast %25 : vector<1x40xf32> to vector<8x40xf32>
    %27 = arith.addf %24, %26 : vector<8x40xf32>
    %28 = math.tanh %27 : vector<8x40xf32>
    %c0_23 = arith.constant 0 : index
    %c0_24 = arith.constant 0 : index
    %29 = vector.load %arg10[%c0_23, %c0_24] : memref<8x40xf32, #tpu.memory_space<vmem>>, vector<8x40xf32>
    tpu.vector_store %arg10[%c0_23, %c0_24], %28 {strides = array<i32>} : memref<8x40xf32, #tpu.memory_space<vmem>>, vector<8x40xf32>,
    return
  }
  func.func @transform_0(%arg0: i32) -> (i32, i32) {
    %c0_i32 = arith.constant 0 : i32
    %c0_i32_0 = arith.constant 0 : i32
    return %arg0, %c0_i32 : i32, i32
  }
  func.func @transform_1(%arg0: i32) -> (i32, i32) {
    %c0_i32 = arith.constant 0 : i32
    %c0_i32_0 = arith.constant 0 : i32
    %c0_i32_1 = arith.constant 0 : i32
    return %c0_i32, %c0_i32_0 : i32, i32
  }
  func.func @transform_2(%arg0: i32) -> (i32, i32) {
    %c0_i32 = arith.constant 0 : i32
    %c0_i32_0 = arith.constant 0 : i32
    %c0_i32_1 = arith.constant 0 : i32
    return %c0_i32, %c0_i32_0 : i32, i32
  }
  func.func @transform_3(%arg0: i32) -> (i32, i32) {
    %c0_i32 = arith.constant 0 : i32
    %c0_i32_0 = arith.constant 0 : i32
    %c0_i32_1 = arith.constant 0 : i32
    return %c0_i32, %c0_i32_0 : i32, i32
  }
  func.func @transform_4(%arg0: i32) -> (i32, i32) {
    %c0_i32 = arith.constant 0 : i32
    %c0_i32_0 = arith.constant 0 : i32
    %c0_i32_1 = arith.constant 0 : i32
    return %c0_i32, %c0_i32_0 : i32, i32
  }
  func.func @transform_5(%arg0: i32) -> (i32, i32) {
    %c0_i32 = arith.constant 0 : i32
    %c0_i32_0 = arith.constant 0 : i32
    %c0_i32_1 = arith.constant 0 : i32
    return %c0_i32, %c0_i32_0 : i32, i32
  }
  func.func @transform_6(%arg0: i32) -> (i32, i32) {
    %c0_i32 = arith.constant 0 : i32
    %c0_i32_0 = arith.constant 0 : i32
    %c0_i32_1 = arith.constant 0 : i32
    return %c0_i32, %c0_i32_0 : i32, i32
  }
  func.func @transform_7(%arg0: i32) -> (i32, i32) {
    %c0_i32 = arith.constant 0 : i32
    %c0_i32_0 = arith.constant 0 : i32
    %c0_i32_1 = arith.constant 0 : i32
    return %c0_i32, %c0_i32_0 : i32, i32
  }
  func.func @transform_8(%arg0: i32) -> (i32, i32) {
    %c0_i32 = arith.constant 0 : i32
    %c0_i32_0 = arith.constant 0 : i32
    %c0_i32_1 = arith.constant 0 : i32
    return %c0_i32, %c0_i32_0 : i32, i32
  }
  func.func @transform_9(%arg0: i32) -> (i32, i32) {
    %c0_i32 = arith.constant 0 : i32
    %c0_i32_0 = arith.constant 0 : i32
    return %arg0, %c0_i32 : i32, i32
  }
}

</mosaic_0001>

<llo_original>
// kernel: tpu_custom_call.1
$region0: #{tpu_custom_call.1}
  #allocation0 [shape = 'u32[]', space=smem, size = 0x4, offset = 0x4, fixed_abs, tag = 'smem constant byte address 0x4 - core index']
  #allocation1 [shape = 'u32[144,128]{1,0:T(1,128)}', space=vmem, size = 0x12000, scoped, tag = 'internal scratch']
  %s0 = inlined_call_operand.vmem [shape: bf16[8,128], index: 0, kind: input, shape index: {}]
  %s1 = inlined_call_operand.vmem [shape: f32[128,256], index: 1, kind: input, shape index: {}]
  %s2 = inlined_call_operand.vmem [shape: f32[1,256], index: 2, kind: input, shape index: {}]
  %s3 = inlined_call_operand.hbm [shape: f32[256,128], index: 3, kind: input, shape index: {}]
  %s4 = inlined_call_operand.vmem [shape: f32[1,128], index: 4, kind: input, shape index: {}]
  %s5 = inlined_call_operand.vmem [shape: f32[128,64], index: 5, kind: input, shape index: {}]
  %s6 = inlined_call_operand.vmem [shape: f32[1,64], index: 6, kind: input, shape index: {}]
  %s7 = inlined_call_operand.vmem [shape: f32[64,40], index: 7, kind: input, shape index: {}]
  %s8 = inlined_call_operand.vmem [shape: f32[1,40], index: 8, kind: input, shape index: {}]
  %s9 = inlined_call_operand.hbm [shape: f32[8,40], index: 9, kind: output, shape index: {}]
  %s10 = sld [smem:[#allocation0]]
  $region50: #{tpu_custom_call.1} parent=0
    _
  %s12 = ssub.s32 1, %s10
  %s13 = scalar_select 0, %s12, %s10
  $region1: #{tpu_custom_call.1} parent=0
    #allocation2 [shape = 'u8[131072]{0}', space=vmem, size = 0x20000, scoped, tag = 'input window, operand 3, single buffered']
    #allocation3 [shape = 's32[1]{0}', space=sflag, size = 0x4, scoped, tag = 'scoped memory for tpu_custom_call.1']
    #allocation4 [shape = 's32[1]{0}', space=sflag, size = 0x4, scoped, tag = 'scoped memory for tpu_custom_call.1']
    #allocation5 [shape = 'u8[4096]{0}', space=vmem, size = 0x1000, scoped, tag = 'output window, operand 0, single buffered']
    %14 = vsyncpa [#allocation3], 0
    %15 = vsyncpa [#allocation4], 0
    // Predicated region
    $region2: #{tpu_custom_call.1} parent=1 // pred_check
      _
    $region3: #{tpu_custom_call.1} parent=1 // pred_check_branch
      %17 = sbr.rel (0) target = $region5
    $region4: #{tpu_custom_call.1} parent=1 // pred_region
      _
    $region5: #{tpu_custom_call.1} parent=1 // pred_fallthru
      _
    // Predicated region
    $region6: #{tpu_custom_call.1} parent=1 // pred_check
      _
    $region7: #{tpu_custom_call.1} parent=1 // pred_check_branch
      %19 = sbr.rel (0) target = $region9
    $region8: #{tpu_custom_call.1} parent=1 // pred_region
      _
    $region9: #{tpu_custom_call.1} parent=1 // pred_fallthru
      _
    // Predicated region
    $region10: #{tpu_custom_call.1} parent=1 // pred_check
      _
    $region11: #{tpu_custom_call.1} parent=1 // pred_check_branch
      %21 = sbr.rel (0) target = $region13
    $region12: #{tpu_custom_call.1} parent=1 // pred_region
      _
    $region13: #{tpu_custom_call.1} parent=1 // pred_fallthru
      _
    // Predicated region
    $region14: #{tpu_custom_call.1} parent=1 // pred_check
      _
    $region15: #{tpu_custom_call.1} parent=1 // pred_check_branch
      %23 = sbr.rel (0) target = $region17
    $region16: #{tpu_custom_call.1} parent=1 // pred_region
      %s25 = ssub.s32 4096, 4096
      %26 = vsyncadd [#allocation3], %s25
      %s27 = sshll.u32 [#allocation2], 4
      %s28 = int_to_ptr.vmem [resolvable:$true] %s27
      %33 = dma.hbm_to_vmem [thread:$0]  %s3, 4096, %s28, [#allocation3], 128, 128, 8
    $region17: #{tpu_custom_call.1} parent=1 // pred_fallthru
      _
    // Predicated region
    $region18: #{tpu_custom_call.1} parent=1 // pred_check
      _
    $region19: #{tpu_custom_call.1} parent=1 // pred_check_branch
      %35 = sbr.rel (0) target = $region21
    $region20: #{tpu_custom_call.1} parent=1 // pred_region
      _
    $region21: #{tpu_custom_call.1} parent=1 // pred_fallthru
      _
    // Predicated region
    $region22: #{tpu_custom_call.1} parent=1 // pred_check
      _
    $region23: #{tpu_custom_call.1} parent=1 // pred_check_branch
      %37 = sbr.rel (0) target = $region25
    $region24: #{tpu_custom_call.1} parent=1 // pred_region
      _
    $region25: #{tpu_custom_call.1} parent=1 // pred_fallthru
      _
    // Predicated region
    $region26: #{tpu_custom_call.1} parent=1 // pred_check
      _
    $region27: #{tpu_custom_call.1} parent=1 // pred_check_branch
      %39 = sbr.rel (0) target = $region29
    $region28: #{tpu_custom_call.1} parent=1 // pred_region
      _
    $region29: #{tpu_custom_call.1} parent=1 // pred_fallthru
      _
    // Predicated region
    $region30: #{tpu_custom_call.1} parent=1 // pred_check
      _
    $region31: #{tpu_custom_call.1} parent=1 // pred_check_branch
      %41 = sbr.rel (0) target = $region33
    $region32: #{tpu_custom_call.1} parent=1 // pred_region
      _
    $region33: #{tpu_custom_call.1} parent=1 // pred_fallthru
      _
    // Predicated region
    $region34: #{tpu_custom_call.1} parent=1 // pred_check
      _
    $region35: #{tpu_custom_call.1} parent=1 // pred_check_branch
      %43 = sbr.rel (0) target = $region37
    $region36: #{tpu_custom_call.1} parent=1 // pred_region
      _
    $region37: #{tpu_custom_call.1} parent=1 // pred_fallthru
      _
    // Predicated region
    $region38: #{tpu_custom_call.1} parent=1 // pred_check
      _
    $region39: #{tpu_custom_call.1} parent=1 // pred_check_branch
      %45 = sbr.rel (0) target = $region41
    $region40: #{tpu_custom_call.1} parent=1 // pred_region
      %46 = dma.done [#allocation3], 4096
    $region41: #{tpu_custom_call.1} parent=1 // pred_fallthru
      _
    %v47 = vld [vmem:[%s0] sm:$0xf]
    %v48 = vunpack.c.l.bf16 %v47
    %v49 = vld [vmem:[%s1] sm:$0xff]
    %v50 = vld [vmem:[%s1 + $0x8] sm:$0xff]
    %v51 = vld [vmem:[%s1 + $0x10] sm:$0xff]
    %v52 = vld [vmem:[%s1 + $0x18] sm:$0xff]
    %v53 = vld [vmem:[%s1 + $0x20] sm:$0xff]
    %v54 = vld [vmem:[%s1 + $0x28] sm:$0xff]
    %v55 = vld [vmem:[%s1 + $0x30] sm:$0xff]
    %v56 = vld [vmem:[%s1 + $0x38] sm:$0xff]
    %v57 = vld [vmem:[%s1 + $0x40] sm:$0xff]
    %v58 = vld [vmem:[%s1 + $0x48] sm:$0xff]
    %v59 = vld [vmem:[%s1 + $0x50] sm:$0xff]
    %v60 = vld [vmem:[%s1 + $0x58] sm:$0xff]
    %v61 = vld [vmem:[%s1 + $0x60] sm:$0xff]
    %v62 = vld [vmem:[%s1 + $0x68] sm:$0xff]
    %v63 = vld [vmem:[%s1 + $0x70] sm:$0xff]
    %v64 = vld [vmem:[%s1 + $0x78] sm:$0xff]
    %v65 = vld [vmem:[%s1 + $0x80] sm:$0xff]
    %v66 = vld [vmem:[%s1 + $0x88] sm:$0xff]
    %v67 = vld [vmem:[%s1 + $0x90] sm:$0xff]
    %v68 = vld [vmem:[%s1 + $0x98] sm:$0xff]
    %v69 = vld [vmem:[%s1 + $0xa0] sm:$0xff]
    %v70 = vld [vmem:[%s1 + $0xa8] sm:$0xff]
    %v71 = vld [vmem:[%s1 + $0xb0] sm:$0xff]
    %v72 = vld [vmem:[%s1 + $0xb8] sm:$0xff]
    %v73 = vld [vmem:[%s1 + $0xc0] sm:$0xff]
    %v74 = vld [vmem:[%s1 + $0xc8] sm:$0xff]
    %v75 = vld [vmem:[%s1 + $0xd0] sm:$0xff]
    %v76 = vld [vmem:[%s1 + $0xd8] sm:$0xff]
    %v77 = vld [vmem:[%s1 + $0xe0] sm:$0xff]
    %v78 = vld [vmem:[%s1 + $0xe8] sm:$0xff]
    %v79 = vld [vmem:[%s1 + $0xf0] sm:$0xff]
    %v80 = vld [vmem:[%s1 + $0xf8] sm:$0xff]
    %v81 = vld [vmem:[%s2] sm:$0x3]
    %v83 = vlaneseq
    %v84 = vshrl.u32 %v83, 7
    %v85 = vsub.s32 0, %v84
    %v86 = vrot.slane %v81, %v85
    %v87 = vlaneseq
    %v88 = vshrl.u32 %v87, 7
    %v89 = vsub.s32 1, %v88
    %v90 = vrot.slane %v81, %v89
    %93 = vmatprep.subr.mxu0 %v80
    %94 = vmatpush1.msra.mxu0 %v79
    %95 = vmatprep.subr.mxu0 %v78
    %96 = vmatpush1.msra.mxu0 %v77
    %97 = vmatprep.subr.mxu0 %v76
    %98 = vmatpush1.msra.mxu0 %v75
    %99 = vmatprep.subr.mxu0 %v74
    %100 = vmatpush1.msra.mxu0 %v73
    %101 = vmatprep.subr.mxu0 %v72
    %102 = vmatpush1.msra.mxu0 %v71
    %103 = vmatprep.subr.mxu0 %v70
    %104 = vmatpush1.msra.mxu0 %v69
    %105 = vmatprep.subr.mxu0 %v68
    %106 = vmatpush1.msra.mxu0 %v67
    %107 = vmatprep.subr.mxu0 %v66
    %108 = vmatpush1.msra.mxu0 %v65
    %109 = vmatprep.subr.mxu0 %v64
    %110 = vmatpush1.msra.mxu0 %v63
    %111 = vmatprep.subr.mxu0 %v62
    %112 = vmatpush1.msra.mxu0 %v61
    %113 = vmatprep.subr.mxu0 %v60
    %114 = vmatpush1.msra.mxu0 %v59
    %115 = vmatprep.subr.mxu0 %v58
    %116 = vmatpush1.msra.mxu0 %v57
    %117 = vmatprep.subr.mxu0 %v56
    %118 = vmatpush1.msra.mxu0 %v55
    %119 = vmatprep.subr.mxu0 %v54
    %120 = vmatpush1.msra.mxu0 %v53
    %121 = vmatprep.subr.mxu0 %v52
    %122 = vmatpush1.msra.mxu0 %v51
    %123 = vmatprep.subr.mxu0 %v50
    %124 = vmatpush1.msra.mxu0 %v49
    %125 = vmatprep.subr.mxu0 0.0
    %126 = vmatpush2.msra.mxu0 0.0
    %127 = vmatprep.subr.mxu0 0.0
    %128 = vmatpush2.msra.mxu0 0.0
    %129 = vmatprep.subr.mxu0 0.0
    %130 = vmatpush2.msra.mxu0 0.0
    %131 = vmatprep.subr.mxu0 0.0
    %132 = vmatpush2.msra.mxu0 0.0
    %133 = vmatprep.subr.mxu0 0.0
    %134 = vmatpush2.msra.mxu0 0.0
    %135 = vmatprep.subr.mxu0 0.0
    %136 = vmatpush2.msra.mxu0 0.0
    %137 = vmatprep.subr.mxu0 0.0
    %138 = vmatpush2.msra.mxu0 0.0
    %139 = vmatprep.subr.mxu0 0.0
    %140 = vmatpush2.msra.mxu0 0.0
    %141 = vmatprep.subr.mxu0 0.0
    %142 = vmatpush2.msra.mxu0 0.0
    %143 = vmatprep.subr.mxu0 0.0
    %144 = vmatpush2.msra.mxu0 0.0
    %145 = vmatprep.subr.mxu0 0.0
    %146 = vmatpush2.msra.mxu0 0.0
    %147 = vmatprep.subr.mxu0 0.0
    %148 = vmatpush2.msra.mxu0 0.0
    %149 = vmatprep.subr.mxu0 0.0
    %150 = vmatpush2.msra.mxu0 0.0
    %151 = vmatprep.subr.mxu0 0.0
    %152 = vmatpush2.msra.mxu0 0.0
    %153 = vmatprep.subr.mxu0 0.0
    %154 = vmatpush2.msra.mxu0 0.0
    %155 = vmatprep.subr.mxu0 0.0
    %156 = vmatpush2.msra.mxu0 0.0
    %157 = vmatprep.mubr.f32.mxu0 0.0
    %158 = vmatmul.mubr.f32.gmra.mxu0 %v48
    %v159 = vpop.f32.mrf.mxu0
    %v160 = vadd.f32 %v86, %v159
    %v161 = vpop.f32.mrf.mxu0
    %v162 = vadd.f32 %v90, %v161
    %163 = vdwg.mxu0
    %v164 = vmax.f32 %v160, 0.0
    %v165 = vmax.f32 %v162, 0.0
    %v166 = vld [vmem:[#allocation2] sm:$0xff]
    %v167 = vld [vmem:[#allocation2 + $0x8] sm:$0xff]
    %v168 = vld [vmem:[#allocation2 + $0x10] sm:$0xff]
    %v169 = vld [vmem:[#allocation2 + $0x18] sm:$0xff]
    %v170 = vld [vmem:[#allocation2 + $0x20] sm:$0xff]
    %v171 = vld [vmem:[#allocation2 + $0x28] sm:$0xff]
    %v172 = vld [vmem:[#allocation2 + $0x30] sm:$0xff]
    %v173 = vld [vmem:[#allocation2 + $0x38] sm:$0xff]
    %v174 = vld [vmem:[#allocation2 + $0x40] sm:$0xff]
    %v175 = vld [vmem:[#allocation2 + $0x48] sm:$0xff]
    %v176 = vld [vmem:[#allocation2 + $0x50] sm:$0xff]
    %v177 = vld [vmem:[#allocation2 + $0x58] sm:$0xff]
    %v178 = vld [vmem:[#allocation2 + $0x60] sm:$0xff]
    %v179 = vld [vmem:[#allocation2 + $0x68] sm:$0xff]
    %v180 = vld [vmem:[#allocation2 + $0x70] sm:$0xff]
    %v181 = vld [vmem:[#allocation2 + $0x78] sm:$0xff]
    %v182 = vld [vmem:[#allocation2 + $0x80] sm:$0xff]
    %v183 = vld [vmem:[#allocation2 + $0x88] sm:$0xff]
    %v184 = vld [vmem:[#allocation2 + $0x90] sm:$0xff]
    %v185 = vld [vmem:[#allocation2 + $0x98] sm:$0xff]
    %v186 = vld [vmem:[#allocation2 + $0xa0] sm:$0xff]
    %v187 = vld [vmem:[#allocation2 + $0xa8] sm:$0xff]
    %v188 = vld [vmem:[#allocation2 + $0xb0] sm:$0xff]
    %v189 = vld [vmem:[#allocation2 + $0xb8] sm:$0xff]
    %v190 = vld [vmem:[#allocation2 + $0xc0] sm:$0xff]
    %v191 = vld [vmem:[#allocation2 + $0xc8] sm:$0xff]
    %v192 = vld [vmem:[#allocation2 + $0xd0] sm:$0xff]
    %v193 = vld [vmem:[#allocation2 + $0xd8] sm:$0xff]
    %v194 = vld [vmem:[#allocation2 + $0xe0] sm:$0xff]
    %v195 = vld [vmem:[#allocation2 + $0xe8] sm:$0xff]
    %v196 = vld [vmem:[#allocation2 + $0xf0] sm:$0xff]
    %v197 = vld [vmem:[#allocation2 + $0xf8] sm:$0xff]
    %v198 = vld [vmem:[%s4] sm:$0x1]
    %v200 = vlaneseq
    %v201 = vshrl.u32 %v200, 7
    %v202 = vsub.s32 0, %v201
    %v203 = vrot.slane %v198, %v202
    %205 = vmatprep.subr.mxu0 0.0
    %206 = vmatpush1.msra.mxu0 %v181
    %207 = vmatprep.subr.mxu0 0.0
    %208 = vmatpush1.msra.mxu0 %v180
    %209 = vmatprep.subr.mxu0 0.0
    %210 = vmatpush1.msra.mxu0 %v179
    %211 = vmatprep.subr.mxu0 0.0
    %212 = vmatpush1.msra.mxu0 %v178
    %213 = vmatprep.subr.mxu0 0.0
    %214 = vmatpush1.msra.mxu0 %v177
    %215 = vmatprep.subr.mxu0 0.0
    %216 = vmatpush1.msra.mxu0 %v176
    %217 = vmatprep.subr.mxu0 0.0
    %218 = vmatpush1.msra.mxu0 %v175
    %219 = vmatprep.subr.mxu0 0.0
    %220 = vmatpush1.msra.mxu0 %v174
    %221 = vmatprep.subr.mxu0 0.0
    %222 = vmatpush1.msra.mxu0 %v173
    %223 = vmatprep.subr.mxu0 0.0
    %224 = vmatpush1.msra.mxu0 %v172
    %225 = vmatprep.subr.mxu0 0.0
    %226 = vmatpush1.msra.mxu0 %v171
    %227 = vmatprep.subr.mxu0 0.0
    %228 = vmatpush1.msra.mxu0 %v170
    %229 = vmatprep.subr.mxu0 0.0
    %230 = vmatpush1.msra.mxu0 %v169
    %231 = vmatprep.subr.mxu0 0.0
    %232 = vmatpush1.msra.mxu0 %v168
    %233 = vmatprep.subr.mxu0 0.0
    %234 = vmatpush1.msra.mxu0 %v167
    %235 = vmatprep.subr.mxu0 0.0
    %236 = vmatpush1.msra.mxu0 %v166
    %237 = vmatprep.subr.mxu0 0.0
    %238 = vmatpush2.msra.mxu0 %v197
    %239 = vmatprep.subr.mxu0 0.0
    %240 = vmatpush2.msra.mxu0 %v196
    %241 = vmatprep.subr.mxu0 0.0
    %242 = vmatpush2.msra.mxu0 %v195
    %243 = vmatprep.subr.mxu0 0.0
    %244 = vmatpush2.msra.mxu0 %v194
    %245 = vmatprep.subr.mxu0 0.0
    %246 = vmatpush2.msra.mxu0 %v193
    %247 = vmatprep.subr.mxu0 0.0
    %248 = vmatpush2.msra.mxu0 %v192
    %249 = vmatprep.subr.mxu0 0.0
    %250 = vmatpush2.msra.mxu0 %v191
    %251 = vmatprep.subr.mxu0 0.0
    %252 = vmatpush2.msra.mxu0 %v190
    %253 = vmatprep.subr.mxu0 0.0
    %254 = vmatpush2.msra.mxu0 %v189
    %255 = vmatprep.subr.mxu0 0.0
    %256 = vmatpush2.msra.mxu0 %v188
    %257 = vmatprep.subr.mxu0 0.0
    %258 = vmatpush2.msra.mxu0 %v187
    %259 = vmatprep.subr.mxu0 0.0
    %260 = vmatpush2.msra.mxu0 %v186
    %261 = vmatprep.subr.mxu0 0.0
    %262 = vmatpush2.msra.mxu0 %v185
    %263 = vmatprep.subr.mxu0 0.0
    %264 = vmatpush2.msra.mxu0 %v184
    %265 = vmatprep.subr.mxu0 0.0
    %266 = vmatpush2.msra.mxu0 %v183
    %267 = vmatprep.subr.mxu0 0.0
    %268 = vmatpush2.msra.mxu0 %v182
    %269 = vmatprep.mubr.f32.mxu0 %v165
    %270 = vmatmul.mubr.f32.gmra.mxu0 %v164
    %v271 = vpop.f32.mrf.mxu0
    %v272 = vadd.f32 %v203, %v271
    %v273 = vpop.f32.mrf.mxu0
    %274 = vdwg.mxu0
    %v275 = vmax.f32 %v272, 0.0
    %v276 = vld [vmem:[%s5] sm:$0xff]
    %v277 = vld [vmem:[%s5 + $0x8] sm:$0xff]
    %v278 = vld [vmem:[%s5 + $0x10] sm:$0xff]
    %v279 = vld [vmem:[%s5 + $0x18] sm:$0xff]
    %v280 = vld [vmem:[%s5 + $0x20] sm:$0xff]
    %v281 = vld [vmem:[%s5 + $0x28] sm:$0xff]
    %v282 = vld [vmem:[%s5 + $0x30] sm:$0xff]
    %v283 = vld [vmem:[%s5 + $0x38] sm:$0xff]
    %v284 = vld [vmem:[%s5 + $0x40] sm:$0xff]
    %v285 = vld [vmem:[%s5 + $0x48] sm:$0xff]
    %v286 = vld [vmem:[%s5 + $0x50] sm:$0xff]
    %v287 = vld [vmem:[%s5 + $0x58] sm:$0xff]
    %v288 = vld [vmem:[%s5 + $0x60] sm:$0xff]
    %v289 = vld [vmem:[%s5 + $0x68] sm:$0xff]
    %v290 = vld [vmem:[%s5 + $0x70] sm:$0xff]
    %v291 = vld [vmem:[%s5 + $0x78] sm:$0xff]
    %v292 = vld [vmem:[%s6] sm:$0x1]
    %v294 = vlaneseq
    %v295 = vshrl.u32 %v294, 7
    %v296 = vsub.s32 0, %v295
    %v297 = vrot.slane %v292, %v296
    %299 = vmatprep.subr.mxu0 0.0
    %300 = vmatpush1.msra.mxu0 %v291
    %301 = vmatprep.subr.mxu0 0.0
    %302 = vmatpush1.msra.mxu0 %v290
    %303 = vmatprep.subr.mxu0 0.0
    %304 = vmatpush1.msra.mxu0 %v289
    %305 = vmatprep.subr.mxu0 0.0
    %306 = vmatpush1.msra.mxu0 %v288
    %307 = vmatprep.subr.mxu0 0.0
    %308 = vmatpush1.msra.mxu0 %v287
    %309 = vmatprep.subr.mxu0 0.0
    %310 = vmatpush1.msra.mxu0 %v286
    %311 = vmatprep.subr.mxu0 0.0
    %312 = vmatpush1.msra.mxu0 %v285
    %313 = vmatprep.subr.mxu0 0.0
    %314 = vmatpush1.msra.mxu0 %v284
    %315 = vmatprep.subr.mxu0 0.0
    %316 = vmatpush1.msra.mxu0 %v283
    %317 = vmatprep.subr.mxu0 0.0
    %318 = vmatpush1.msra.mxu0 %v282
    %319 = vmatprep.subr.mxu0 0.0
    %320 = vmatpush1.msra.mxu0 %v281
    %321 = vmatprep.subr.mxu0 0.0
    %322 = vmatpush1.msra.mxu0 %v280
    %323 = vmatprep.subr.mxu0 0.0
    %324 = vmatpush1.msra.mxu0 %v279
    %325 = vmatprep.subr.mxu0 0.0
    %326 = vmatpush1.msra.mxu0 %v278
    %327 = vmatprep.subr.mxu0 0.0
    %328 = vmatpush1.msra.mxu0 %v277
    %329 = vmatprep.subr.mxu0 0.0
    %330 = vmatpush1.msra.mxu0 %v276
    %331 = vmatprep.subr.mxu0 0.0
    %332 = vmatpush2.msra.mxu0 0.0
    %333 = vmatprep.subr.mxu0 0.0
    %334 = vmatpush2.msra.mxu0 0.0
    %335 = vmatprep.subr.mxu0 0.0
    %336 = vmatpush2.msra.mxu0 0.0
    %337 = vmatprep.subr.mxu0 0.0
    %338 = vmatpush2.msra.mxu0 0.0
    %339 = vmatprep.subr.mxu0 0.0
    %340 = vmatpush2.msra.mxu0 0.0
    %341 = vmatprep.subr.mxu0 0.0
    %342 = vmatpush2.msra.mxu0 0.0
    %343 = vmatprep.subr.mxu0 0.0
    %344 = vmatpush2.msra.mxu0 0.0
    %345 = vmatprep.subr.mxu0 0.0
    %346 = vmatpush2.msra.mxu0 0.0
    %347 = vmatprep.subr.mxu0 0.0
    %348 = vmatpush2.msra.mxu0 0.0
    %349 = vmatprep.subr.mxu0 0.0
    %350 = vmatpush2.msra.mxu0 0.0
    %351 = vmatprep.subr.mxu0 0.0
    %352 = vmatpush2.msra.mxu0 0.0
    %353 = vmatprep.subr.mxu0 0.0
    %354 = vmatpush2.msra.mxu0 0.0
    %355 = vmatprep.subr.mxu0 0.0
    %356 = vmatpush2.msra.mxu0 0.0
    %357 = vmatprep.subr.mxu0 0.0
    %358 = vmatpush2.msra.mxu0 0.0
    %359 = vmatprep.subr.mxu0 0.0
    %360 = vmatpush2.msra.mxu0 0.0
    %361 = vmatprep.subr.mxu0 0.0
    %362 = vmatpush2.msra.mxu0 0.0
    %363 = vmatprep.mubr.f32.mxu0 0.0
    %364 = vmatmul.mubr.f32.gmra.mxu0 %v275
    %v365 = vpop.f32.mrf.mxu0
    %v366 = vadd.f32 %v297, %v365
    %v367 = vpop.f32.mrf.mxu0
    %368 = vdwg.mxu0
    %v369 = vmax.f32 %v366, 0.0
    %v370 = vld [vmem:[%s7] sm:$0xff]
    %v371 = vld [vmem:[%s7 + $0x8] sm:$0xff]
    %v372 = vld [vmem:[%s7 + $0x10] sm:$0xff]
    %v373 = vld [vmem:[%s7 + $0x18] sm:$0xff]
    %v374 = vld [vmem:[%s7 + $0x20] sm:$0xff]
    %v375 = vld [vmem:[%s7 + $0x28] sm:$0xff]
    %v376 = vld [vmem:[%s7 + $0x30] sm:$0xff]
    %v377 = vld [vmem:[%s7 + $0x38] sm:$0xff]
    %v378 = vld [vmem:[%s8] sm:$0x1]
    %v380 = vlaneseq
    %v381 = vshrl.u32 %v380, 7
    %v382 = vsub.s32 0, %v381
    %v383 = vrot.slane %v378, %v382
    %vm385 = vcmask 523264
    %v387 = vsel %vm385, %v369, 0
    %389 = vmatprep.subr.mxu0 0.0
    %390 = vmatpush1.msra.mxu0 0.0
    %391 = vmatprep.subr.mxu0 0.0
    %392 = vmatpush1.msra.mxu0 0.0
    %393 = vmatprep.subr.mxu0 0.0
    %394 = vmatpush1.msra.mxu0 0.0
    %395 = vmatprep.subr.mxu0 0.0
    %396 = vmatpush1.msra.mxu0 0.0
    %397 = vmatprep.subr.mxu0 0.0
    %398 = vmatpush1.msra.mxu0 0.0
    %399 = vmatprep.subr.mxu0 0.0
    %400 = vmatpush1.msra.mxu0 0.0
    %401 = vmatprep.subr.mxu0 0.0
    %402 = vmatpush1.msra.mxu0 0.0
    %403 = vmatprep.subr.mxu0 0.0
    %404 = vmatpush1.msra.mxu0 0.0
    %405 = vmatprep.subr.mxu0 0.0
    %406 = vmatpush1.msra.mxu0 %v377
    %407 = vmatprep.subr.mxu0 0.0
    %408 = vmatpush1.msra.mxu0 %v376
    %409 = vmatprep.subr.mxu0 0.0
    %410 = vmatpush1.msra.mxu0 %v375
    %411 = vmatprep.subr.mxu0 0.0
    %412 = vmatpush1.msra.mxu0 %v374
    %413 = vmatprep.subr.mxu0 0.0
    %414 = vmatpush1.msra.mxu0 %v373
    %415 = vmatprep.subr.mxu0 0.0
    %416 = vmatpush1.msra.mxu0 %v372
    %417 = vmatprep.subr.mxu0 0.0
    %418 = vmatpush1.msra.mxu0 %v371
    %419 = vmatprep.subr.mxu0 0.0
    %420 = vmatpush1.msra.mxu0 %v370
    %421 = vmatprep.subr.mxu0 0.0
    %422 = vmatpush2.msra.mxu0 0.0
    %423 = vmatprep.subr.mxu0 0.0
    %424 = vmatpush2.msra.mxu0 0.0
    %425 = vmatprep.subr.mxu0 0.0
    %426 = vmatpush2.msra.mxu0 0.0
    %427 = vmatprep.subr.mxu0 0.0
    %428 = vmatpush2.msra.mxu0 0.0
    %429 = vmatprep.subr.mxu0 0.0
    %430 = vmatpush2.msra.mxu0 0.0
    %431 = vmatprep.subr.mxu0 0.0
    %432 = vmatpush2.msra.mxu0 0.0
    %433 = vmatprep.subr.mxu0 0.0
    %434 = vmatpush2.msra.mxu0 0.0
    %435 = vmatprep.subr.mxu0 0.0
    %436 = vmatpush2.msra.mxu0 0.0
    %437 = vmatprep.subr.mxu0 0.0
    %438 = vmatpush2.msra.mxu0 0.0
    %439 = vmatprep.subr.mxu0 0.0
    %440 = vmatpush2.msra.mxu0 0.0
    %441 = vmatprep.subr.mxu0 0.0
    %442 = vmatpush2.msra.mxu0 0.0
    %443 = vmatprep.subr.mxu0 0.0
    %444 = vmatpush2.msra.mxu0 0.0
    %445 = vmatprep.subr.mxu0 0.0
    %446 = vmatpush2.msra.mxu0 0.0
    %447 = vmatprep.subr.mxu0 0.0
    %448 = vmatpush2.msra.mxu0 0.0
    %449 = vmatprep.subr.mxu0 0.0
    %450 = vmatpush2.msra.mxu0 0.0
    %451 = vmatprep.subr.mxu0 0.0
    %452 = vmatpush2.msra.mxu0 0.0
    %453 = vmatprep.mubr.f32.mxu0 0.0
    %454 = vmatmul.mubr.f32.gmra.mxu0 %v387
    %v455 = vpop.f32.mrf.mxu0
    %v456 = vadd.f32 %v383, %v455
    %v457 = vpop.f32.mrf.mxu0
    %458 = vdwg.mxu0
    %v459 = vtanh.pop %v456
    %vm460 = vcmask 326656
    %461 = vst.msk [vmem:[#allocation5] sm:$0xff] %vm460, %v459
    // Predicated region
    $region42: #{tpu_custom_call.1} parent=1 // pred_check
      _
    $region43: #{tpu_custom_call.1} parent=1 // pred_check_branch
      %463 = sbr.rel (0) target = $region45
    $region44: #{tpu_custom_call.1} parent=1 // pred_region
      %s465 = ssub.s32 128, 128
      %466 = vsyncadd [#allocation4], %s465
      %s468 = sshll.u32 [#allocation5], 4
      %s469 = int_to_ptr.vmem [resolvable:$true] %s468
      %471 = dma.vmem_to_hbm [thread:$0]  %s469, 128, %s9, [#allocation4]
    $region45: #{tpu_custom_call.1} parent=1 // pred_fallthru
      _
    // Predicated region
    $region46: #{tpu_custom_call.1} parent=1 // pred_check
      _
    $region47: #{tpu_custom_call.1} parent=1 // pred_check_branch
      %473 = sbr.rel (0) target = $region49
    $region48: #{tpu_custom_call.1} parent=1 // pred_region
      %474 = dma.done [#allocation4], 128
    $region49: #{tpu_custom_call.1} parent=1 // pred_fallthru
      _
    %475 = vsyncpa [#allocation3], 1
    %476 = vsyncpa [#allocation4], 1

</llo_original>
